<compile_context>
chip_gen: v7x
topology: tpu7x:2x2x1
jax: 0.10.0
libtpu: 0.0.40
codegen_flags: <defaults>
</compile_context>

<pallas_src>
import functools

import jax
import jax.numpy as jnp
from jax.experimental import pallas as pl
from jax.experimental.pallas import tpu as pltpu


def _fcnn_kernel(n_res, *refs):
    """refs = (x, w_in, b_in, [w_res_k, b_res_k]*n_res, w_out_row, b_out, o)."""
    x_ref = refs[0]
    w_in_ref, b_in_ref = refs[1], refs[2]
    res_refs = refs[3:3 + 2 * n_res]
    w_out_ref = refs[3 + 2 * n_res]      # (1, width)  f32 (row form of w_out)
    b_out_ref = refs[4 + 2 * n_res]      # (1,)        f32, SMEM scalar
    o_ref = refs[5 + 2 * n_res]          # (tb//128, 128) f32, lane-dense output block

    # Input layer: Linear(input_dim, width) + ReLU.
    # x is DMA'd in its original dtype; the cast to the MXU dtype is an in-kernel VPU op
    # (hides under the matmul) instead of a separate wrapper-side XLA pass over the batch.
    x = x_ref[...].astype(w_in_ref.dtype)
    h = jnp.dot(x, w_in_ref[...], preferred_element_type=jnp.float32)
    h = jnp.maximum(h + b_in_ref[...], 0.0)

    # Residual blocks: h = relu(h @ W + b + h).  MXU in param dtype, f32 residual chain.
    for k in range(n_res):
        w = res_refs[2 * k][...]
        b = res_refs[2 * k + 1][...]
        out = jnp.dot(h.astype(w.dtype), w, preferred_element_type=jnp.float32)
        h = jnp.maximum(out + b + h, 0.0)

    # Output layer: Linear(width, 1) as VPU multiply + lane reduction; keeps the MXU out
    # of a 1-wide matmul and feeds a full-width, unmasked lane-dense vector store.
    y = jnp.sum(h * w_out_ref[...], axis=-1) + b_out_ref[0]        # (tb,)
    o_ref[...] = y.reshape(o_ref.shape).astype(o_ref.dtype)


def fcnn_forward(x, params, *, batch_tile=4096, param_dtype=jnp.bfloat16,
                 vmem_limit_bytes=48 * 1024 * 1024):
    """Fused FCNN forward: x (B, input_dim) f32 -> logits (B, 1) f32.

    batch_tile must be a multiple of 1024.  For very large batches on v7x, choose
    batch_tile so the number of tiles is >= 2 and even (2 TensorCores per chip).
    """
    B, input_dim = x.shape
    width = params["w_in"].shape[1]
    n_res = len(params["res"])

    tb = int(batch_tile)
    assert tb % 1024 == 0, "batch_tile must be a multiple of 1024"

    if B <= tb:
        # Single tile: shrink the tile to the (128-rounded) batch -> no wasted rows,
        # and the output block equals the full output array (no alignment constraint).
        tb = max(128, ((B + 127) // 128) * 128)
        n_tiles = 1
    else:
        n_tiles = -(-B // tb)            # last tile may be ragged (partial x read)

    # Weights are tiny (~22 KB); cast them once in the wrapper.  x is passed untouched.
    w_in = params["w_in"].astype(param_dtype)
    b_in = params["b_in"].astype(jnp.float32)
    res_args = []
    for (w, b) in params["res"]:
        res_args += [w.astype(param_dtype), b.astype(jnp.float32)]
    w_out_row = params["w_out"].reshape(1, width).astype(jnp.float32)
    b_out = params["b_out"].reshape(1).astype(jnp.float32)

    args = [x, w_in, b_in, *res_args, w_out_row, b_out]

    # x tiled over batch; parameters as single full-array blocks (constant index map,
    # kept resident in VMEM across grid steps); b_out scalar goes to SMEM.
    in_specs = [pl.BlockSpec((tb, input_dim), lambda i: (i, 0))]
    for a in args[1:-1]:
        in_specs.append(pl.BlockSpec(a.shape, lambda i: (0, 0)))
    in_specs.append(pl.BlockSpec(memory_space=pltpu.MemorySpace.SMEM))

    # Lane-dense output slab sized to the full grid -> every output block is written
    # unmasked and fully in-bounds; rows beyond B are garbage and sliced off below.
    out_rows = n_tiles * (tb // 128)
    out_specs = pl.BlockSpec((tb // 128, 128), lambda i: (i, 0))

    flops = 2 * B * (input_dim * width + n_res * width * width + width)
    bytes_accessed = (int(x.size) * x.dtype.itemsize
                      + out_rows * 128 * 4
                      + sum(int(a.size) * a.dtype.itemsize for a in args[1:]))
    cost = pl.CostEstimate(flops=flops, transcendentals=0,
                           bytes_accessed=bytes_accessed)

    kernel = functools.partial(_fcnn_kernel, n_res)

    out2d = pl.pallas_call(
        kernel,
        out_shape=jax.ShapeDtypeStruct((out_rows, 128), jnp.float32),
        grid_spec=pltpu.PrefetchScalarGridSpec(
            num_scalar_prefetch=0,
            grid=(n_tiles,),
            in_specs=in_specs,
            out_specs=out_specs,
        ),
        compiler_params=pltpu.CompilerParams(
            dimension_semantics=("parallel",),
            vmem_limit_bytes=int(vmem_limit_bytes)),
        cost_estimate=cost,
    )(*args)

    # Undo the lane-dense packing: (out_rows, 128) -> (out_rows*128, 1) -> (B, 1).
    return out2d.reshape(out_rows * 128, 1)[:B]


def init_params(key, input_dim=20, hidden_layers=2, width=64):
    """Deterministic init mirroring nn.Linear's U(-1/sqrt(fan_in), 1/sqrt(fan_in)).

    Weights are stored as (in_features, out_features) = PyTorch weight transposed,
    so the kernel computes x @ W + b directly.
    """
    def linear(k, fan_in, fan_out):
        kw, kb = jax.random.split(k)
        bound = 1.0 / jnp.sqrt(jnp.float32(fan_in))
        w = jax.random.uniform(kw, (fan_in, fan_out), jnp.float32, -bound, bound)
        b = jax.random.uniform(kb, (1, fan_out), jnp.float32, -bound, bound)
        return w, b

    n_res = hidden_layers - 1
    keys = jax.random.split(key, 2 + n_res)
    w_in, b_in = linear(keys[0], input_dim, width)
    res = [linear(keys[1 + i], width, width) for i in range(n_res)]
    w_out, b_out = linear(keys[1 + n_res], width, 1)
    return {"w_in": w_in, "b_in": b_in, "res": res,
            "w_out": w_out, "b_out": b_out}


def fcnn_reference(x, params, param_dtype=jnp.bfloat16):
    """Pure-JAX reference mirroring the kernel's dtype policy (param_dtype MXU, f32 chain)."""
    h = jnp.dot(x.astype(param_dtype), params["w_in"].astype(param_dtype),
                preferred_element_type=jnp.float32)
    h = jnp.maximum(h + params["b_in"].astype(jnp.float32), 0.0)
    for (w, b) in params["res"]:
        out = jnp.dot(h.astype(param_dtype), w.astype(param_dtype),
                      preferred_element_type=jnp.float32)
        h = jnp.maximum(out + b.astype(jnp.float32) + h, 0.0)
    w_row = params["w_out"].reshape(1, -1).astype(jnp.float32)
    return jnp.sum(h * w_row, axis=-1, keepdims=True) + params["b_out"].astype(jnp.float32)


if __name__ == "__main__":
    key = jax.random.PRNGKey(0)
    kx, kp, kx2, kx3 = jax.random.split(key, 4)

    input_dim, hidden_layers, width = 20, 2, 64
    params = init_params(kp, input_dim=input_dim,
                         hidden_layers=hidden_layers, width=width)

    # 1) Small demo batch: single 128-row tile, ragged x read.
    x = jax.random.normal(kx, (8, input_dim), jnp.float32)
    out = jax.block_until_ready(fcnn_forward(x, params))
    ref = fcnn_reference(x, params)
    assert out.shape == (8, 1), out.shape
    assert jnp.allclose(out, ref, atol=2e-3, rtol=2e-3), "mismatch (small batch)"

    # 2) Ragged batch under the default batch_tile: single shrunken tile, no wrapper pad.
    x2 = jax.random.normal(kx2, (2000, input_dim), jnp.float32)
    out2 = jax.block_until_ready(fcnn_forward(x2, params))
    ref2 = fcnn_reference(x2, params)
    assert out2.shape == (2000, 1), out2.shape
    assert jnp.allclose(out2, ref2, atol=2e-3, rtol=2e-3), "mismatch (single big tile)"

    # 3) Multi-tile parallel grid with a ragged last tile (partial input block).
    out3 = jax.block_until_ready(fcnn_forward(x2, params, batch_tile=1024))
    assert out3.shape == (2000, 1), out3.shape
    assert jnp.allclose(out3, ref2, atol=2e-3, rtol=2e-3), "mismatch (grid>1)"

    # 4) Full-f32 path for consumers needing f32-accurate logits.
    x3 = jax.random.normal(kx3, (300, input_dim), jnp.float32)
    out4 = jax.block_until_ready(fcnn_forward(x3, params, param_dtype=jnp.float32))
    ref4 = fcnn_reference(x3, params, param_dtype=jnp.float32)
    assert out4.shape == (300, 1), out4.shape
    assert jnp.allclose(out4, ref4, atol=1e-4, rtol=1e-4), "mismatch (f32 path)"

    print("KERNEL_OK")
</pallas_src>

<mosaic_0001>
module attributes {stable_mosaic.version = 11 : i64} {
  func.func @_fcnn_kernel(%arg0: i32, %arg1: memref<128x20xf32, #tpu.memory_space<vmem>>, %arg2: memref<20x64xbf16, #tpu.memory_space<vmem>>, %arg3: memref<1x64xf32, #tpu.memory_space<vmem>>, %arg4: memref<64x64xbf16, #tpu.memory_space<vmem>>, %arg5: memref<1x64xf32, #tpu.memory_space<vmem>>, %arg6: memref<1x64xf32, #tpu.memory_space<vmem>>, %arg7: memref<1xf32, #tpu.memory_space<smem>>, %arg8: memref<1x128xf32, #tpu.memory_space<vmem>>) attributes {dimension_semantics = [#tpu.dimension_semantics<parallel>], iteration_bounds = array<i64: 1>, scalar_prefetch = 0 : i64, scratch_operands = 0 : i64, tpu.core_type = #tpu.core_type<tc>, window_params = [{transform_indices = @transform_0, window_bounds = array<i64: 128, 20>}, {pipeline_mode = #tpu.pipeline_mode<synchronous>, transform_indices = @transform_1, window_bounds = array<i64: 20, 64>}, {pipeline_mode = #tpu.pipeline_mode<synchronous>, transform_indices = @transform_2, window_bounds = array<i64: 1, 64>}, {pipeline_mode = #tpu.pipeline_mode<synchronous>, transform_indices = @transform_3, window_bounds = array<i64: 64, 64>}, {pipeline_mode = #tpu.pipeline_mode<synchronous>, transform_indices = @transform_4, window_bounds = array<i64: 1, 64>}, {pipeline_mode = #tpu.pipeline_mode<synchronous>, transform_indices = @transform_5, window_bounds = array<i64: 1, 64>}, {transform_indices = @transform_6, window_bounds = array<i64: 1>}, {transform_indices = @transform_7, window_bounds = array<i64: 1, 128>}]} {
    %c0 = arith.constant 0 : index
    %c0_0 = arith.constant 0 : index
    %0 = vector.load %arg1[%c0, %c0_0] : memref<128x20xf32, #tpu.memory_space<vmem>>, vector<128x20xf32>
    %1 = arith.truncf %0 : vector<128x20xf32> to vector<128x20xbf16>
    %c0_1 = arith.constant 0 : index
    %c0_2 = arith.constant 0 : index
    %2 = vector.load %arg2[%c0_1, %c0_2] : memref<20x64xbf16, #tpu.memory_space<vmem>>, vector<20x64xbf16>
    %cst = arith.constant dense<0.000000e+00> : vector<128x64xf32>
    %3 = tpu.matmul %1, %2, %cst {dimension_numbers = #tpu.dot_dimension_numbers<[1], [0], [0], [1], [0, 0, 1, 1], [], []>} : vector<128x20xbf16>, vector<20x64xbf16>, vector<128x64xf32> -> vector<128x64xf32>
    %c0_3 = arith.constant 0 : index
    %c0_4 = arith.constant 0 : index
    %4 = vector.load %arg3[%c0_3, %c0_4] : memref<1x64xf32, #tpu.memory_space<vmem>>, vector<1x64xf32>
    %5 = vector.broadcast %4 : vector<1x64xf32> to vector<128x64xf32>
    %6 = arith.addf %3, %5 : vector<128x64xf32>
    %cst_5 = arith.constant 0.000000e+00 : f32
    %7 = vector.broadcast %cst_5 : f32 to vector<128x64xf32>
    %8 = arith.maximumf %6, %7 : vector<128x64xf32>
    %c0_6 = arith.constant 0 : index
    %c0_7 = arith.constant 0 : index
    %9 = vector.load %arg4[%c0_6, %c0_7] : memref<64x64xbf16, #tpu.memory_space<vmem>>, vector<64x64xbf16>
    %c0_8 = arith.constant 0 : index
    %c0_9 = arith.constant 0 : index
    %10 = vector.load %arg5[%c0_8, %c0_9] : memref<1x64xf32, #tpu.memory_space<vmem>>, vector<1x64xf32>
    %11 = arith.truncf %8 : vector<128x64xf32> to vector<128x64xbf16>
    %cst_10 = arith.constant dense<0.000000e+00> : vector<128x64xf32>
    %12 = tpu.matmul %11, %9, %cst_10 {dimension_numbers = #tpu.dot_dimension_numbers<[1], [0], [0], [1], [0, 0, 1, 1], [], []>} : vector<128x64xbf16>, vector<64x64xbf16>, vector<128x64xf32> -> vector<128x64xf32>
    %13 = vector.broadcast %10 : vector<1x64xf32> to vector<128x64xf32>
    %14 = arith.addf %12, %13 : vector<128x64xf32>
    %15 = arith.addf %14, %8 : vector<128x64xf32>
    %cst_11 = arith.constant 0.000000e+00 : f32
    %16 = vector.broadcast %cst_11 : f32 to vector<128x64xf32>
    %17 = arith.maximumf %15, %16 : vector<128x64xf32>
    %c0_12 = arith.constant 0 : index
    %c0_13 = arith.constant 0 : index
    %18 = vector.load %arg6[%c0_12, %c0_13] : memref<1x64xf32, #tpu.memory_space<vmem>>, vector<1x64xf32>
    %19 = vector.broadcast %18 : vector<1x64xf32> to vector<128x64xf32>
    %20 = arith.mulf %17, %19 : vector<128x64xf32>
    %cst_14 = arith.constant dense<0.000000e+00> : vector<128xf32>
    %21 = vector.multi_reduction <add>, %20, %cst_14 [1] : vector<128x64xf32> to vector<128xf32>
    %c0_15 = arith.constant 0 : index
    %22 = memref.load %arg7[%c0_15] : memref<1xf32, #tpu.memory_space<smem>>
    %23 = vector.broadcast %22 : f32 to vector<128xf32>
    %24 = arith.addf %21, %23 : vector<128xf32>
    %25 = vector.shape_cast %24 : vector<128xf32> to vector<1x128xf32>
    %c0_16 = arith.constant 0 : index
    %c0_17 = arith.constant 0 : index
    %26 = vector.load %arg8[%c0_16, %c0_17] : memref<1x128xf32, #tpu.memory_space<vmem>>, vector<1x128xf32>
    tpu.vector_store %arg8[%c0_16, %c0_17], %25 {strides = array<i32>} : memref<1x128xf32, #tpu.memory_space<vmem>>, vector<1x128xf32>,
    return
  }
  func.func @transform_0(%arg0: i32) -> (i32, i32) {
    %c0_i32 = arith.constant 0 : i32
    %c0_i32_0 = arith.constant 0 : i32
    return %arg0, %c0_i32 : i32, i32
  }
  func.func @transform_1(%arg0: i32) -> (i32, i32) {
    %c0_i32 = arith.constant 0 : i32
    %c0_i32_0 = arith.constant 0 : i32
    %c0_i32_1 = arith.constant 0 : i32
    return %c0_i32, %c0_i32_0 : i32, i32
  }
  func.func @transform_2(%arg0: i32) -> (i32, i32) {
    %c0_i32 = arith.constant 0 : i32
    %c0_i32_0 = arith.constant 0 : i32
    %c0_i32_1 = arith.constant 0 : i32
    return %c0_i32, %c0_i32_0 : i32, i32
  }
  func.func @transform_3(%arg0: i32) -> (i32, i32) {
    %c0_i32 = arith.constant 0 : i32
    %c0_i32_0 = arith.constant 0 : i32
    %c0_i32_1 = arith.constant 0 : i32
    return %c0_i32, %c0_i32_0 : i32, i32
  }
  func.func @transform_4(%arg0: i32) -> (i32, i32) {
    %c0_i32 = arith.constant 0 : i32
    %c0_i32_0 = arith.constant 0 : i32
    %c0_i32_1 = arith.constant 0 : i32
    return %c0_i32, %c0_i32_0 : i32, i32
  }
  func.func @transform_5(%arg0: i32) -> (i32, i32) {
    %c0_i32 = arith.constant 0 : i32
    %c0_i32_0 = arith.constant 0 : i32
    %c0_i32_1 = arith.constant 0 : i32
    return %c0_i32, %c0_i32_0 : i32, i32
  }
  func.func @transform_6(%arg0: i32) -> i32 {
    %c0_i32 = arith.constant 0 : i32
    %c0_i32_0 = arith.constant 0 : i32
    return %c0_i32 : i32
  }
  func.func @transform_7(%arg0: i32) -> (i32, i32) {
    %c0_i32 = arith.constant 0 : i32
    %c0_i32_0 = arith.constant 0 : i32
    return %arg0, %c0_i32 : i32, i32
  }
}

</mosaic_0001>

<llo_original>
// kernel: tpu_custom_call.1
$region0: #{tpu_custom_call.1}
  #allocation0 [shape = 'u32[]', space=smem, size = 0x4, offset = 0x4, fixed_abs, tag = 'smem constant byte address 0x4 - core index']
  #allocation1 [shape = 'u32[144,128]{1,0:T(1,128)}', space=vmem, size = 0x12000, scoped, tag = 'internal scratch']
  #allocation2 [shape = 'f32[1]{0:T(128)S(6)}', space=smem, size = 0x200, scoped, tag = 'scoped memory for tpu_custom_call.1']
  %s0 = inlined_call_operand.hbm [shape: f32[8,20], index: 0, kind: input, shape index: {}]
  %s1 = inlined_call_operand.hbm [shape: bf16[20,64], index: 1, kind: input, shape index: {}]
  %s2 = inlined_call_operand.vmem [shape: f32[1,64], index: 2, kind: input, shape index: {}]
  %s3 = inlined_call_operand.hbm [shape: bf16[64,64], index: 3, kind: input, shape index: {}]
  %s4 = inlined_call_operand.vmem [shape: f32[1,64], index: 4, kind: input, shape index: {}]
  %s5 = inlined_call_operand.vmem [shape: f32[1,64], index: 5, kind: input, shape index: {}]
  %s6 = inlined_call_operand.<no memory space> [shape: f32[1], index: 6, kind: input, shape index: {}]
  %s7 = inlined_call_operand.hbm [shape: f32[1,128], index: 7, kind: output, shape index: {}]
  %s8 = sld [smem:[#allocation0]]
  $region50: #{tpu_custom_call.1} parent=0
    _
  %s10 = ssub.s32 1, %s8
  %s11 = scalar_select 0, %s10, %s8
  %12 = sst [smem:[#allocation2]] %s6
  $region1: #{tpu_custom_call.1} parent=0
    #allocation3 [shape = 'u8[65536]{0}', space=vmem, size = 0x10000, scoped, tag = 'input window, operand 0, single buffered']
    #allocation4 [shape = 's32[1]{0}', space=sflag, size = 0x4, scoped, tag = 'scoped memory for tpu_custom_call.1']
    #allocation5 [shape = 's32[1]{0}', space=sflag, size = 0x4, scoped, tag = 'scoped memory for tpu_custom_call.1']
    #allocation6 [shape = 'u8[6144]{0}', space=vmem, size = 0x1800, scoped, tag = 'input window, operand 1, single buffered']
    #allocation7 [shape = 's32[1]{0}', space=sflag, size = 0x4, scoped, tag = 'scoped memory for tpu_custom_call.1']
    #allocation8 [shape = 'u8[16384]{0}', space=vmem, size = 0x4000, scoped, tag = 'input window, operand 3, single buffered']
    #allocation9 [shape = 'u8[512]{0}', space=vmem, size = 0x400, scoped, tag = 'output window, operand 0, single buffered']
    %13 = vsyncpa [#allocation4], 0
    %14 = vsyncpa [#allocation7], 0
    %15 = vsyncpa [#allocation5], 0
    // Predicated region
    $region2: #{tpu_custom_call.1} parent=1 // pred_check
      _
    $region3: #{tpu_custom_call.1} parent=1 // pred_check_branch
      %17 = sbr.rel (0) target = $region5
    $region4: #{tpu_custom_call.1} parent=1 // pred_region
      %s19 = ssub.s32 2048, 128
      %20 = vsyncadd [#allocation4], %s19
      %s21 = sshll.u32 [#allocation3], 4
      %s22 = int_to_ptr.vmem [resolvable:$true] %s21
      %27 = dma.hbm_to_vmem [thread:$0]  %s0, 128, %s22, [#allocation4], 128, 128, 8
    $region5: #{tpu_custom_call.1} parent=1 // pred_fallthru
      _
    // Predicated region
    $region6: #{tpu_custom_call.1} parent=1 // pred_check
      _
    $region7: #{tpu_custom_call.1} parent=1 // pred_check_branch
      %29 = sbr.rel (0) target = $region9
    $region8: #{tpu_custom_call.1} parent=1 // pred_region
      %s31 = ssub.s32 192, 192
      %32 = vsyncadd [#allocation7], %s31
      %s33 = sshll.u32 [#allocation6], 4
      %s34 = int_to_ptr.vmem [resolvable:$true] %s33
      %39 = dma.hbm_to_vmem [thread:$0]  %s1, 192, %s34, [#allocation7], 64, 64, 4
    $region9: #{tpu_custom_call.1} parent=1 // pred_fallthru
      _
    // Predicated region
    $region10: #{tpu_custom_call.1} parent=1 // pred_check
      _
    $region11: #{tpu_custom_call.1} parent=1 // pred_check_branch
      %41 = sbr.rel (0) target = $region13
    $region12: #{tpu_custom_call.1} parent=1 // pred_region
      _
    $region13: #{tpu_custom_call.1} parent=1 // pred_fallthru
      _
    // Predicated region
    $region14: #{tpu_custom_call.1} parent=1 // pred_check
      _
    $region15: #{tpu_custom_call.1} parent=1 // pred_check_branch
      %43 = sbr.rel (0) target = $region17
    $region16: #{tpu_custom_call.1} parent=1 // pred_region
      %s45 = ssub.s32 512, 512
      %46 = vsyncadd [#allocation7], %s45
      %s47 = sshll.u32 [#allocation8], 4
      %s48 = int_to_ptr.vmem [resolvable:$true] %s47
      %53 = dma.hbm_to_vmem [thread:$0]  %s3, 512, %s48, [#allocation7], 64, 64, 4
    $region17: #{tpu_custom_call.1} parent=1 // pred_fallthru
      _
    // Predicated region
    $region18: #{tpu_custom_call.1} parent=1 // pred_check
      _
    $region19: #{tpu_custom_call.1} parent=1 // pred_check_branch
      %55 = sbr.rel (0) target = $region21
    $region20: #{tpu_custom_call.1} parent=1 // pred_region
      _
    $region21: #{tpu_custom_call.1} parent=1 // pred_fallthru
      _
    // Predicated region
    $region22: #{tpu_custom_call.1} parent=1 // pred_check
      _
    $region23: #{tpu_custom_call.1} parent=1 // pred_check_branch
      %57 = sbr.rel (0) target = $region25
    $region24: #{tpu_custom_call.1} parent=1 // pred_region
      _
    $region25: #{tpu_custom_call.1} parent=1 // pred_fallthru
      _
    // Predicated region
    $region26: #{tpu_custom_call.1} parent=1 // pred_check
      _
    $region27: #{tpu_custom_call.1} parent=1 // pred_check_branch
      %59 = sbr.rel (0) target = $region29
    $region28: #{tpu_custom_call.1} parent=1 // pred_region
      _
    $region29: #{tpu_custom_call.1} parent=1 // pred_fallthru
      _
    // Predicated region
    $region30: #{tpu_custom_call.1} parent=1 // pred_check
      _
    $region31: #{tpu_custom_call.1} parent=1 // pred_check_branch
      %61 = sbr.rel (0) target = $region33
    $region32: #{tpu_custom_call.1} parent=1 // pred_region
      %62 = dma.done [#allocation4], 2048
    $region33: #{tpu_custom_call.1} parent=1 // pred_fallthru
      _
    // Predicated region
    $region34: #{tpu_custom_call.1} parent=1 // pred_check
      _
    $region35: #{tpu_custom_call.1} parent=1 // pred_check_branch
      %64 = sbr.rel (0) target = $region37
    $region36: #{tpu_custom_call.1} parent=1 // pred_region
      %65 = dma.done [#allocation7], 192
    $region37: #{tpu_custom_call.1} parent=1 // pred_fallthru
      _
    // Predicated region
    $region38: #{tpu_custom_call.1} parent=1 // pred_check
      _
    $region39: #{tpu_custom_call.1} parent=1 // pred_check_branch
      %67 = sbr.rel (0) target = $region41
    $region40: #{tpu_custom_call.1} parent=1 // pred_region
      %68 = dma.done [#allocation7], 512
    $region41: #{tpu_custom_call.1} parent=1 // pred_fallthru
      _
    %v70 = vld [vmem:[#allocation3] sm:$0xff]
    %v71 = vld [vmem:[#allocation3 + $0x8] sm:$0xff]
    %v72 = vld [vmem:[#allocation3 + $0x10] sm:$0xff]
    %v73 = vld [vmem:[#allocation3 + $0x18] sm:$0xff]
    %v74 = vld [vmem:[#allocation3 + $0x20] sm:$0xff]
    %v75 = vld [vmem:[#allocation3 + $0x28] sm:$0xff]
    %v76 = vld [vmem:[#allocation3 + $0x30] sm:$0xff]
    %v77 = vld [vmem:[#allocation3 + $0x38] sm:$0xff]
    %v78 = vld [vmem:[#allocation3 + $0x40] sm:$0xff]
    %v79 = vld [vmem:[#allocation3 + $0x48] sm:$0xff]
    %v80 = vld [vmem:[#allocation3 + $0x50] sm:$0xff]
    %v81 = vld [vmem:[#allocation3 + $0x58] sm:$0xff]
    %v82 = vld [vmem:[#allocation3 + $0x60] sm:$0xff]
    %v83 = vld [vmem:[#allocation3 + $0x68] sm:$0xff]
    %v84 = vld [vmem:[#allocation3 + $0x70] sm:$0xff]
    %v85 = vld [vmem:[#allocation3 + $0x78] sm:$0xff]
    %v86 = vpack.c.bf16 %v71, %v70
    %v87 = vpack.c.bf16 %v73, %v72
    %v88 = vpack.c.bf16 %v75, %v74
    %v89 = vpack.c.bf16 %v77, %v76
    %v90 = vpack.c.bf16 %v79, %v78
    %v91 = vpack.c.bf16 %v81, %v80
    %v92 = vpack.c.bf16 %v83, %v82
    %v93 = vpack.c.bf16 %v85, %v84
    %v94 = vld [vmem:[#allocation6] sm:$0xf]
    %v95 = vld [vmem:[#allocation6 + $0x4] sm:$0xf]
    %v96 = vld [vmem:[#allocation6 + $0x8] sm:$0x3]
    %v97 = vld [vmem:[%s2] sm:$0x1]
    %v99 = vlaneseq
    %v100 = vshrl.u32 %v99, 7
    %v101 = vsub.s32 0, %v100
    %v102 = vrot.slane %v97, %v101
    %v107 = vunpack.c.l.b16 %v94
    %v108 = vunpack.c.l.b16 %v95
    %v109 = vunpack.c.l.b16 %v96
    %v110 = vpack.c.b16 %v108, %v107
    %v111 = vpack.c.b16 %v109, %v109
    %vm113 = vcmask 162816
    %v115 = vsel %vm113, %v86, 0
    %v118 = vsel %vm113, %v87, 0
    %v121 = vsel %vm113, %v88, 0
    %v124 = vsel %vm113, %v89, 0
    %v127 = vsel %vm113, %v90, 0
    %v130 = vsel %vm113, %v91, 0
    %v133 = vsel %vm113, %v92, 0
    %v136 = vsel %vm113, %v93, 0
    %vm138 = vcmask 1041408
    %v140 = vsel %vm138, %v111, 0
    %142 = vmatprep.subr.bf16.mxu0 0
    %143 = vmatpush1.bf16.msra.mxu0 %v110
    %144 = vmatprep.subr.bf16.mxu0 0
    %145 = vmatpush1.bf16.msra.mxu0 %v140
    %146 = vmatprep.subr.bf16.mxu0 0
    %147 = vmatpush1.bf16.msra.mxu0 0
    %148 = vmatprep.subr.bf16.mxu0 0
    %149 = vmatpush1.bf16.msra.mxu0 0
    %150 = vmatprep.subr.bf16.mxu0 0
    %151 = vmatpush1.bf16.msra.mxu0 0
    %152 = vmatprep.subr.bf16.mxu0 0
    %153 = vmatpush1.bf16.msra.mxu0 0
    %154 = vmatprep.subr.bf16.mxu0 0
    %155 = vmatpush1.bf16.msra.mxu0 0
    %156 = vmatprep.subr.bf16.mxu0 0
    %157 = vmatpush1.bf16.msra.mxu0 0
    %158 = vmatprep.subr.bf16.mxu0 0
    %159 = vmatpush1.bf16.msra.mxu0 0
    %160 = vmatprep.subr.bf16.mxu0 0
    %161 = vmatpush1.bf16.msra.mxu0 0
    %162 = vmatprep.subr.bf16.mxu0 0
    %163 = vmatpush1.bf16.msra.mxu0 0
    %164 = vmatprep.subr.bf16.mxu0 0
    %165 = vmatpush1.bf16.msra.mxu0 0
    %166 = vmatprep.subr.bf16.mxu0 0
    %167 = vmatpush1.bf16.msra.mxu0 0
    %168 = vmatprep.subr.bf16.mxu0 0
    %169 = vmatpush1.bf16.msra.mxu0 0
    %170 = vmatprep.subr.bf16.mxu0 0
    %171 = vmatpush1.bf16.msra.mxu0 0
    %172 = vmatprep.subr.bf16.mxu0 0
    %173 = vmatpush1.bf16.msra.mxu0 0
    %174 = vmatprep.mubr.bf16.mxu0 0
    %175 = vmatmul.mubr.bf16.gmra.mrb[0].mxu0 %v115
    %v176 = vpop.f32.mrb[0].mxu0
    %v177 = vadd.f32 %v102, %v176
    %v178 = vpop.f32.mrb[0].mxu0
    %v179 = vpop.f32.mrb[0].mxu0
    %v180 = vadd.f32 %v102, %v179
    %v181 = vpop.f32.mrb[0].mxu0
    %182 = vmatprep.mubr.bf16.mxu0 0
    %183 = vmatmul.mubr.bf16.gmra.mrb[0].mxu0 %v118
    %v184 = vpop.f32.mrb[0].mxu0
    %v185 = vadd.f32 %v102, %v184
    %v186 = vpop.f32.mrb[0].mxu0
    %v187 = vpop.f32.mrb[0].mxu0
    %v188 = vadd.f32 %v102, %v187
    %v189 = vpop.f32.mrb[0].mxu0
    %190 = vmatprep.mubr.bf16.mxu0 0
    %191 = vmatmul.mubr.bf16.gmra.mrb[0].mxu0 %v121
    %v192 = vpop.f32.mrb[0].mxu0
    %v193 = vadd.f32 %v102, %v192
    %v194 = vpop.f32.mrb[0].mxu0
    %v195 = vpop.f32.mrb[0].mxu0
    %v196 = vadd.f32 %v102, %v195
    %v197 = vpop.f32.mrb[0].mxu0
    %198 = vmatprep.mubr.bf16.mxu0 0
    %199 = vmatmul.mubr.bf16.gmra.mrb[0].mxu0 %v124
    %v200 = vpop.f32.mrb[0].mxu0
    %v201 = vadd.f32 %v102, %v200
    %v202 = vpop.f32.mrb[0].mxu0
    %v203 = vpop.f32.mrb[0].mxu0
    %v204 = vadd.f32 %v102, %v203
    %v205 = vpop.f32.mrb[0].mxu0
    %206 = vmatprep.mubr.bf16.mxu0 0
    %207 = vmatmul.mubr.bf16.gmra.mrb[0].mxu0 %v127
    %v208 = vpop.f32.mrb[0].mxu0
    %v209 = vadd.f32 %v102, %v208
    %v210 = vpop.f32.mrb[0].mxu0
    %v211 = vpop.f32.mrb[0].mxu0
    %v212 = vadd.f32 %v102, %v211
    %v213 = vpop.f32.mrb[0].mxu0
    %214 = vmatprep.mubr.bf16.mxu0 0
    %215 = vmatmul.mubr.bf16.gmra.mrb[0].mxu0 %v130
    %v216 = vpop.f32.mrb[0].mxu0
    %v217 = vadd.f32 %v102, %v216
    %v218 = vpop.f32.mrb[0].mxu0
    %v219 = vpop.f32.mrb[0].mxu0
    %v220 = vadd.f32 %v102, %v219
    %v221 = vpop.f32.mrb[0].mxu0
    %222 = vmatprep.mubr.bf16.mxu0 0
    %223 = vmatmul.mubr.bf16.gmra.mrb[0].mxu0 %v133
    %v224 = vpop.f32.mrb[0].mxu0
    %v225 = vadd.f32 %v102, %v224
    %v226 = vpop.f32.mrb[0].mxu0
    %v227 = vpop.f32.mrb[0].mxu0
    %v228 = vadd.f32 %v102, %v227
    %v229 = vpop.f32.mrb[0].mxu0
    %230 = vmatprep.mubr.bf16.mxu0 0
    %231 = vmatmul.mubr.bf16.gmra.mrb[0].mxu0 %v136
    %v232 = vpop.f32.mrb[0].mxu0
    %v233 = vadd.f32 %v102, %v232
    %v234 = vpop.f32.mrb[0].mxu0
    %v235 = vpop.f32.mrb[0].mxu0
    %v236 = vadd.f32 %v102, %v235
    %v237 = vpop.f32.mrb[0].mxu0
    %238 = vdwg.mxu0
    %v239 = vmax.f32 %v177, 0.0
    %v240 = vmax.f32 %v180, 0.0
    %v241 = vmax.f32 %v185, 0.0
    %v242 = vmax.f32 %v188, 0.0
    %v243 = vmax.f32 %v193, 0.0
    %v244 = vmax.f32 %v196, 0.0
    %v245 = vmax.f32 %v201, 0.0
    %v246 = vmax.f32 %v204, 0.0
    %v247 = vmax.f32 %v209, 0.0
    %v248 = vmax.f32 %v212, 0.0
    %v249 = vmax.f32 %v217, 0.0
    %v250 = vmax.f32 %v220, 0.0
    %v251 = vmax.f32 %v225, 0.0
    %v252 = vmax.f32 %v228, 0.0
    %v253 = vmax.f32 %v233, 0.0
    %v254 = vmax.f32 %v236, 0.0
    %v255 = vld [vmem:[#allocation8] sm:$0xf]
    %v256 = vld [vmem:[#allocation8 + $0x4] sm:$0xf]
    %v257 = vld [vmem:[#allocation8 + $0x8] sm:$0xf]
    %v258 = vld [vmem:[#allocation8 + $0xc] sm:$0xf]
    %v259 = vld [vmem:[#allocation8 + $0x10] sm:$0xf]
    %v260 = vld [vmem:[#allocation8 + $0x14] sm:$0xf]
    %v261 = vld [vmem:[#allocation8 + $0x18] sm:$0xf]
    %v262 = vld [vmem:[#allocation8 + $0x1c] sm:$0xf]
    %v263 = vld [vmem:[%s4] sm:$0x1]
    %v264 = vpack.c.bf16 %v240, %v239
    %v265 = vpack.c.bf16 %v242, %v241
    %v266 = vpack.c.bf16 %v244, %v243
    %v267 = vpack.c.bf16 %v246, %v245
    %v268 = vpack.c.bf16 %v248, %v247
    %v269 = vpack.c.bf16 %v250, %v249
    %v270 = vpack.c.bf16 %v252, %v251
    %v271 = vpack.c.bf16 %v254, %v253
    %v273 = vlaneseq
    %v274 = vshrl.u32 %v273, 7
    %v275 = vsub.s32 0, %v274
    %v276 = vrot.slane %v263, %v275
    %v286 = vunpack.c.l.b16 %v255
    %v287 = vunpack.c.l.b16 %v256
    %v288 = vunpack.c.l.b16 %v257
    %v289 = vunpack.c.l.b16 %v258
    %v290 = vunpack.c.l.b16 %v259
    %v291 = vunpack.c.l.b16 %v260
    %v292 = vunpack.c.l.b16 %v261
    %v293 = vunpack.c.l.b16 %v262
    %v294 = vpack.c.b16 %v287, %v286
    %v295 = vpack.c.b16 %v289, %v288
    %v296 = vpack.c.b16 %v291, %v290
    %v297 = vpack.c.b16 %v293, %v292
    %vm302 = vcmask 523264
    %v304 = vsel %vm302, %v264, 0
    %v307 = vsel %vm302, %v265, 0
    %v310 = vsel %vm302, %v266, 0
    %v313 = vsel %vm302, %v267, 0
    %v316 = vsel %vm302, %v268, 0
    %v319 = vsel %vm302, %v269, 0
    %v322 = vsel %vm302, %v270, 0
    %v325 = vsel %vm302, %v271, 0
    %327 = vmatprep.subr.bf16.mxu0 0
    %328 = vmatpush1.bf16.msra.mxu0 %v294
    %329 = vmatprep.subr.bf16.mxu0 0
    %330 = vmatpush1.bf16.msra.mxu0 %v295
    %331 = vmatprep.subr.bf16.mxu0 0
    %332 = vmatpush1.bf16.msra.mxu0 %v296
    %333 = vmatprep.subr.bf16.mxu0 0
    %334 = vmatpush1.bf16.msra.mxu0 %v297
    %335 = vmatprep.subr.bf16.mxu0 0
    %336 = vmatpush1.bf16.msra.mxu0 0
    %337 = vmatprep.subr.bf16.mxu0 0
    %338 = vmatpush1.bf16.msra.mxu0 0
    %339 = vmatprep.subr.bf16.mxu0 0
    %340 = vmatpush1.bf16.msra.mxu0 0
    %341 = vmatprep.subr.bf16.mxu0 0
    %342 = vmatpush1.bf16.msra.mxu0 0
    %343 = vmatprep.subr.bf16.mxu0 0
    %344 = vmatpush1.bf16.msra.mxu0 0
    %345 = vmatprep.subr.bf16.mxu0 0
    %346 = vmatpush1.bf16.msra.mxu0 0
    %347 = vmatprep.subr.bf16.mxu0 0
    %348 = vmatpush1.bf16.msra.mxu0 0
    %349 = vmatprep.subr.bf16.mxu0 0
    %350 = vmatpush1.bf16.msra.mxu0 0
    %351 = vmatprep.subr.bf16.mxu0 0
    %352 = vmatpush1.bf16.msra.mxu0 0
    %353 = vmatprep.subr.bf16.mxu0 0
    %354 = vmatpush1.bf16.msra.mxu0 0
    %355 = vmatprep.subr.bf16.mxu0 0
    %356 = vmatpush1.bf16.msra.mxu0 0
    %357 = vmatprep.subr.bf16.mxu0 0
    %358 = vmatpush1.bf16.msra.mxu0 0
    %359 = vmatprep.mubr.bf16.mxu0 0
    %360 = vmatmul.mubr.bf16.gmra.mrb[0].mxu0 %v304
    %v361 = vpop.f32.mrb[0].mxu0
    %v362 = vadd.f32 %v276, %v361
    %v363 = vpop.f32.mrb[0].mxu0
    %v364 = vpop.f32.mrb[0].mxu0
    %v365 = vadd.f32 %v276, %v364
    %v366 = vpop.f32.mrb[0].mxu0
    %367 = vmatprep.mubr.bf16.mxu0 0
    %368 = vmatmul.mubr.bf16.gmra.mrb[0].mxu0 %v307
    %v369 = vpop.f32.mrb[0].mxu0
    %v370 = vadd.f32 %v276, %v369
    %v371 = vpop.f32.mrb[0].mxu0
    %v372 = vpop.f32.mrb[0].mxu0
    %v373 = vadd.f32 %v276, %v372
    %v374 = vpop.f32.mrb[0].mxu0
    %375 = vmatprep.mubr.bf16.mxu0 0
    %376 = vmatmul.mubr.bf16.gmra.mrb[0].mxu0 %v310
    %v377 = vpop.f32.mrb[0].mxu0
    %v378 = vadd.f32 %v276, %v377
    %v379 = vpop.f32.mrb[0].mxu0
    %v380 = vpop.f32.mrb[0].mxu0
    %v381 = vadd.f32 %v276, %v380
    %v382 = vpop.f32.mrb[0].mxu0
    %383 = vmatprep.mubr.bf16.mxu0 0
    %384 = vmatmul.mubr.bf16.gmra.mrb[0].mxu0 %v313
    %v385 = vpop.f32.mrb[0].mxu0
    %v386 = vadd.f32 %v276, %v385
    %v387 = vpop.f32.mrb[0].mxu0
    %v388 = vpop.f32.mrb[0].mxu0
    %v389 = vadd.f32 %v276, %v388
    %v390 = vpop.f32.mrb[0].mxu0
    %391 = vmatprep.mubr.bf16.mxu0 0
    %392 = vmatmul.mubr.bf16.gmra.mrb[0].mxu0 %v316
    %v393 = vpop.f32.mrb[0].mxu0
    %v394 = vadd.f32 %v276, %v393
    %v395 = vpop.f32.mrb[0].mxu0
    %v396 = vpop.f32.mrb[0].mxu0
    %v397 = vadd.f32 %v276, %v396
    %v398 = vpop.f32.mrb[0].mxu0
    %399 = vmatprep.mubr.bf16.mxu0 0
    %400 = vmatmul.mubr.bf16.gmra.mrb[0].mxu0 %v319
    %v401 = vpop.f32.mrb[0].mxu0
    %v402 = vadd.f32 %v276, %v401
    %v403 = vpop.f32.mrb[0].mxu0
    %v404 = vpop.f32.mrb[0].mxu0
    %v405 = vadd.f32 %v276, %v404
    %v406 = vpop.f32.mrb[0].mxu0
    %407 = vmatprep.mubr.bf16.mxu0 0
    %408 = vmatmul.mubr.bf16.gmra.mrb[0].mxu0 %v322
    %v409 = vpop.f32.mrb[0].mxu0
    %v410 = vadd.f32 %v276, %v409
    %v411 = vpop.f32.mrb[0].mxu0
    %v412 = vpop.f32.mrb[0].mxu0
    %v413 = vadd.f32 %v276, %v412
    %v414 = vpop.f32.mrb[0].mxu0
    %415 = vmatprep.mubr.bf16.mxu0 0
    %416 = vmatmul.mubr.bf16.gmra.mrb[0].mxu0 %v325
    %v417 = vpop.f32.mrb[0].mxu0
    %v418 = vadd.f32 %v276, %v417
    %v419 = vpop.f32.mrb[0].mxu0
    %v420 = vpop.f32.mrb[0].mxu0
    %v421 = vadd.f32 %v276, %v420
    %v422 = vpop.f32.mrb[0].mxu0
    %423 = vdwg.mxu0
    %v424 = vadd.f32 %v362, %v239
    %v425 = vadd.f32 %v365, %v240
    %v426 = vadd.f32 %v370, %v241
    %v427 = vadd.f32 %v373, %v242
    %v428 = vadd.f32 %v378, %v243
    %v429 = vadd.f32 %v381, %v244
    %v430 = vadd.f32 %v386, %v245
    %v431 = vadd.f32 %v389, %v246
    %v432 = vadd.f32 %v394, %v247
    %v433 = vadd.f32 %v397, %v248
    %v434 = vadd.f32 %v402, %v249
    %v435 = vadd.f32 %v405, %v250
    %v436 = vadd.f32 %v410, %v251
    %v437 = vadd.f32 %v413, %v252
    %v438 = vadd.f32 %v418, %v253
    %v439 = vadd.f32 %v421, %v254
    %v440 = vmax.f32 %v424, 0.0
    %v441 = vmax.f32 %v425, 0.0
    %v442 = vmax.f32 %v426, 0.0
    %v443 = vmax.f32 %v427, 0.0
    %v444 = vmax.f32 %v428, 0.0
    %v445 = vmax.f32 %v429, 0.0
    %v446 = vmax.f32 %v430, 0.0
    %v447 = vmax.f32 %v431, 0.0
    %v448 = vmax.f32 %v432, 0.0
    %v449 = vmax.f32 %v433, 0.0
    %v450 = vmax.f32 %v434, 0.0
    %v451 = vmax.f32 %v435, 0.0
    %v452 = vmax.f32 %v436, 0.0
    %v453 = vmax.f32 %v437, 0.0
    %v454 = vmax.f32 %v438, 0.0
    %v455 = vmax.f32 %v439, 0.0
    %v456 = vld [vmem:[%s5] sm:$0x1]
    %v458 = vlaneseq
    %v459 = vshrl.u32 %v458, 7
    %v460 = vsub.s32 0, %v459
    %v461 = vrot.slane %v456, %v460
    %v463 = vmul.f32 %v440, %v461
    %v464 = vmul.f32 %v441, %v461
    %v465 = vmul.f32 %v442, %v461
    %v466 = vmul.f32 %v443, %v461
    %v467 = vmul.f32 %v444, %v461
    %v468 = vmul.f32 %v445, %v461
    %v469 = vmul.f32 %v446, %v461
    %v470 = vmul.f32 %v447, %v461
    %v471 = vmul.f32 %v448, %v461
    %v472 = vmul.f32 %v449, %v461
    %v473 = vmul.f32 %v450, %v461
    %v474 = vmul.f32 %v451, %v461
    %v475 = vmul.f32 %v452, %v461
    %v476 = vmul.f32 %v453, %v461
    %v477 = vmul.f32 %v454, %v461
    %v478 = vmul.f32 %v455, %v461
    %v479 = vsel %vm302, %v463, 0.0
    %480 = vadd.xlane.f32.xlu0 %v479
    %v481 = vpop.xlane.xlu0 %480
    %v482 = vsel %vm302, %v464, 0.0
    %483 = vadd.xlane.f32.xlu0 %v482
    %v484 = vpop.xlane.xlu0 %483
    %v485 = vsel %vm302, %v465, 0.0
    %486 = vadd.xlane.f32.xlu0 %v485
    %v487 = vpop.xlane.xlu0 %486
    %v488 = vsel %vm302, %v466, 0.0
    %489 = vadd.xlane.f32.xlu0 %v488
    %v490 = vpop.xlane.xlu0 %489
    %v491 = vsel %vm302, %v467, 0.0
    %492 = vadd.xlane.f32.xlu0 %v491
    %v493 = vpop.xlane.xlu0 %492
    %v494 = vsel %vm302, %v468, 0.0
    %495 = vadd.xlane.f32.xlu0 %v494
    %v496 = vpop.xlane.xlu0 %495
    %v497 = vsel %vm302, %v469, 0.0
    %498 = vadd.xlane.f32.xlu0 %v497
    %v499 = vpop.xlane.xlu0 %498
    %v500 = vsel %vm302, %v470, 0.0
    %501 = vadd.xlane.f32.xlu0 %v500
    %v502 = vpop.xlane.xlu0 %501
    %v503 = vsel %vm302, %v471, 0.0
    %504 = vadd.xlane.f32.xlu0 %v503
    %v505 = vpop.xlane.xlu0 %504
    %v506 = vsel %vm302, %v472, 0.0
    %507 = vadd.xlane.f32.xlu0 %v506
    %v508 = vpop.xlane.xlu0 %507
    %v509 = vsel %vm302, %v473, 0.0
    %510 = vadd.xlane.f32.xlu0 %v509
    %v511 = vpop.xlane.xlu0 %510
    %v512 = vsel %vm302, %v474, 0.0
    %513 = vadd.xlane.f32.xlu0 %v512
    %v514 = vpop.xlane.xlu0 %513
    %v515 = vsel %vm302, %v475, 0.0
    %516 = vadd.xlane.f32.xlu0 %v515
    %v517 = vpop.xlane.xlu0 %516
    %v518 = vsel %vm302, %v476, 0.0
    %519 = vadd.xlane.f32.xlu0 %v518
    %v520 = vpop.xlane.xlu0 %519
    %v521 = vsel %vm302, %v477, 0.0
    %522 = vadd.xlane.f32.xlu0 %v521
    %v523 = vpop.xlane.xlu0 %522
    %v524 = vsel %vm302, %v478, 0.0
    %525 = vadd.xlane.f32.xlu0 %v524
    %v526 = vpop.xlane.xlu0 %525
    %s527 = sld [smem:[#allocation2]]
    %v528 = vstv %s527
    %v529 = vadd.f32 %v481, %v528
    %v530 = vadd.f32 %v484, %v528
    %v531 = vadd.f32 %v487, %v528
    %v532 = vadd.f32 %v490, %v528
    %v533 = vadd.f32 %v493, %v528
    %v534 = vadd.f32 %v496, %v528
    %v535 = vadd.f32 %v499, %v528
    %v536 = vadd.f32 %v502, %v528
    %v537 = vadd.f32 %v505, %v528
    %v538 = vadd.f32 %v508, %v528
    %v539 = vadd.f32 %v511, %v528
    %v540 = vadd.f32 %v514, %v528
    %v541 = vadd.f32 %v517, %v528
    %v542 = vadd.f32 %v520, %v528
    %v543 = vadd.f32 %v523, %v528
    %v544 = vadd.f32 %v526, %v528
    %v561 = vlaneseq
    %v562 = vand.u32 %v561, 127
    %v563 = vlaneseq
    %v564 = vshrl.u32 %v563, 7
    %v565 = vsub.s32 %v562, %v564
    %v566 = vrot.slane %v529, %v565
    %v567 = vadd.s32 %v562, 4294967288
    %v568 = vlaneseq
    %v569 = vshrl.u32 %v568, 7
    %v570 = vsub.s32 %v567, %v569
    %v571 = vrot.slane %v530, %v570
    %vm572 = vcmask 130112
    %v573 = vsel %vm572, %v571, %v566
    %v574 = vadd.s32 %v562, 4294967280
    %v575 = vlaneseq
    %v576 = vshrl.u32 %v575, 7
    %v577 = vsub.s32 %v574, %v576
    %v578 = vrot.slane %v531, %v577
    %vm579 = vcmask 195712
    %v580 = vsel %vm579, %v578, %v573
    %v581 = vadd.s32 %v562, 4294967272
    %v582 = vlaneseq
    %v583 = vshrl.u32 %v582, 7
    %v584 = vsub.s32 %v581, %v583
    %v585 = vrot.slane %v532, %v584
    %vm586 = vcmask 261312
    %v587 = vsel %vm586, %v585, %v580
    %v588 = vadd.s32 %v562, 4294967264
    %v589 = vlaneseq
    %v590 = vshrl.u32 %v589, 7
    %v591 = vsub.s32 %v588, %v590
    %v592 = vrot.slane %v533, %v591
    %vm593 = vcmask 326912
    %v594 = vsel %vm593, %v592, %v587
    %v595 = vadd.s32 %v562, 4294967256
    %v596 = vlaneseq
    %v597 = vshrl.u32 %v596, 7
    %v598 = vsub.s32 %v595, %v597
    %v599 = vrot.slane %v534, %v598
    %vm600 = vcmask 392512
    %v601 = vsel %vm600, %v599, %v594
    %v602 = vadd.s32 %v562, 4294967248
    %v603 = vlaneseq
    %v604 = vshrl.u32 %v603, 7
    %v605 = vsub.s32 %v602, %v604
    %v606 = vrot.slane %v535, %v605
    %vm607 = vcmask 458112
    %v608 = vsel %vm607, %v606, %v601
    %v609 = vadd.s32 %v562, 4294967240
    %v610 = vlaneseq
    %v611 = vshrl.u32 %v610, 7
    %v612 = vsub.s32 %v609, %v611
    %v613 = vrot.slane %v536, %v612
    %vm614 = vcmask 523712
    %v615 = vsel %vm614, %v613, %v608
    %v616 = vadd.s32 %v562, 4294967232
    %v617 = vlaneseq
    %v618 = vshrl.u32 %v617, 7
    %v619 = vsub.s32 %v616, %v618
    %v620 = vrot.slane %v537, %v619
    %vm621 = vcmask 589312
    %v622 = vsel %vm621, %v620, %v615
    %v623 = vadd.s32 %v562, 4294967224
    %v624 = vlaneseq
    %v625 = vshrl.u32 %v624, 7
    %v626 = vsub.s32 %v623, %v625
    %v627 = vrot.slane %v538, %v626
    %vm628 = vcmask 654912
    %v629 = vsel %vm628, %v627, %v622
    %v630 = vadd.s32 %v562, 4294967216
    %v631 = vlaneseq
    %v632 = vshrl.u32 %v631, 7
    %v633 = vsub.s32 %v630, %v632
    %v634 = vrot.slane %v539, %v633
    %vm635 = vcmask 720512
    %v636 = vsel %vm635, %v634, %v629
    %v637 = vadd.s32 %v562, 4294967208
    %v638 = vlaneseq
    %v639 = vshrl.u32 %v638, 7
    %v640 = vsub.s32 %v637, %v639
    %v641 = vrot.slane %v540, %v640
    %vm642 = vcmask 786112
    %v643 = vsel %vm642, %v641, %v636
    %v644 = vadd.s32 %v562, 4294967200
    %v645 = vlaneseq
    %v646 = vshrl.u32 %v645, 7
    %v647 = vsub.s32 %v644, %v646
    %v648 = vrot.slane %v541, %v647
    %vm649 = vcmask 851712
    %v650 = vsel %vm649, %v648, %v643
    %v651 = vadd.s32 %v562, 4294967192
    %v652 = vlaneseq
    %v653 = vshrl.u32 %v652, 7
    %v654 = vsub.s32 %v651, %v653
    %v655 = vrot.slane %v542, %v654
    %vm656 = vcmask 917312
    %v657 = vsel %vm656, %v655, %v650
    %v658 = vadd.s32 %v562, 4294967184
    %v659 = vlaneseq
    %v660 = vshrl.u32 %v659, 7
    %v661 = vsub.s32 %v658, %v660
    %v662 = vrot.slane %v543, %v661
    %vm663 = vcmask 982912
    %v664 = vsel %vm663, %v662, %v657
    %v665 = vadd.s32 %v562, 4294967176
    %v666 = vlaneseq
    %v667 = vshrl.u32 %v666, 7
    %v668 = vsub.s32 %v665, %v667
    %v669 = vrot.slane %v544, %v668
    %vm670 = vcmask 1048512
    %v671 = vsel %vm670, %v669, %v664
    %673 = vst [vmem:[#allocation9] sm:$0x1] %v671
    // Predicated region
    $region42: #{tpu_custom_call.1} parent=1 // pred_check
      _
    $region43: #{tpu_custom_call.1} parent=1 // pred_check_branch
      %675 = sbr.rel (0) target = $region45
    $region44: #{tpu_custom_call.1} parent=1 // pred_region
      %s677 = ssub.s32 16, 16
      %678 = vsyncadd [#allocation5], %s677
      %s680 = sshll.u32 [#allocation9], 4
      %s681 = int_to_ptr.vmem [resolvable:$true] %s680
      %683 = dma.vmem_to_hbm [thread:$0]  %s681, 16, %s7, [#allocation5]
    $region45: #{tpu_custom_call.1} parent=1 // pred_fallthru
      _
    // Predicated region
    $region46: #{tpu_custom_call.1} parent=1 // pred_check
      _
    $region47: #{tpu_custom_call.1} parent=1 // pred_check_branch
      %685 = sbr.rel (0) target = $region49
    $region48: #{tpu_custom_call.1} parent=1 // pred_region
      %686 = dma.done [#allocation5], 16
    $region49: #{tpu_custom_call.1} parent=1 // pred_fallthru
      _
    %687 = vsyncpa [#allocation4], 1
    %688 = vsyncpa [#allocation7], 1
    %689 = vsyncpa [#allocation5], 1

</llo_original>
